<compile_context>
chip_gen: v7x
topology: tpu7x:2x2x1
jax: 0.10.0
libtpu: 0.0.40
codegen_flags: <defaults>
</compile_context>

<pallas_src>
import jax
import jax.numpy as jnp
from jax.experimental import pallas as pl
from jax.experimental.pallas import tpu as pltpu


# --------------------------------------------------------------------------
# Kernel 1: attention probabilities over the sequence (B, S), batch-tiled
# --------------------------------------------------------------------------
def probs_kernel(am_ref, last_ref, mask_ref, ur_t_ref, wr_t_ref,
                 vr_w_ref, vr_b_ref, probs_ref):
    TB, S, H = am_ref.shape

    # Ur(all_memory) / Wr(last_memory): bf16 MXU matmuls, f32 accumulation.
    am2d = am_ref[...].reshape(TB * S, H)                          # layout no-op
    proj_all = jnp.dot(am2d, ur_t_ref[...],
                       preferred_element_type=jnp.float32)          # (TB*S, H)
    proj_last = jnp.dot(last_ref[...], wr_t_ref[...],
                        preferred_element_type=jnp.float32)         # (TB, H)

    hidden = jnp.tanh(proj_all.reshape(TB, S, H) + proj_last[:, None, :])

    # Vr (H -> 1) as f32 VPU multiply + lane reduce: no lane-width-1 MXU dot.
    # vr_b is a (1,1) f32 broadcast add (shift-invariant under softmax, kept
    # for semantic fidelity).
    scores = jnp.sum(hidden * vr_w_ref[...], axis=-1) + vr_b_ref[...]   # (TB,S)

    # masked_fill(mask, -1e9)
    scores = jnp.where(mask_ref[...] != 0, jnp.float32(-1000000000.0), scores)

    # masked softmax over the sequence dim; denominator via approx EUP recip.
    m = jnp.max(scores, axis=-1, keepdims=True)
    e = jnp.exp(scores - m)
    denom = jnp.sum(e, axis=-1, keepdims=True)
    probs_ref[...] = e * pl.reciprocal(denom, approx=True)


# --------------------------------------------------------------------------
# Kernel 2: scatter probs onto item ids, tiled over num_item (f32 VPU path)
# --------------------------------------------------------------------------
def scatter_kernel(probs_ref, item_ref, out_ref):
    B, S = probs_ref.shape
    tile_n = out_ref.shape[-1]
    base = pl.program_id(0) * tile_n

    # Lane index constant for this tile; item ids shifted by -base (B,S) so no
    # full-size (B,S,tile_n) iota/one-hot is ever materialized.
    lane = jax.lax.broadcasted_iota(jnp.int32, (B, tile_n), 1)       # (B, tile_n)
    item_rel = item_ref[...] - base                                  # (B, S) int32
    probs = probs_ref[...]                                           # (B, S) f32

    # f32 select-accumulate over the sequence: live data is only the
    # (B, tile_n) accumulator plus two (B,1) columns per step.  S is a small
    # static hyperparameter (seq_len), so a fully unrolled static loop is fine.
    acc = jnp.zeros((B, tile_n), jnp.float32)
    for s in range(S):
        it = jax.lax.slice_in_dim(item_rel, s, s + 1, axis=1)        # (B, 1)
        pv = jax.lax.slice_in_dim(probs, s, s + 1, axis=1)           # (B, 1)
        acc = acc + jnp.where(it == lane, pv, jnp.float32(0.0))
    out_ref[...] = acc


# --------------------------------------------------------------------------
# Generation-aware sizing helpers
# --------------------------------------------------------------------------
def _vmem_capacity_bytes():
    try:
        return int(pltpu.get_tpu_info().vmem_capacity_bytes)
    except Exception:
        return 64 * 1024 * 1024          # v7x-safe fallback


def _pick_tile_b(B, S, H, vmem_cap):
    """Batch tile for the probs kernel.  Live intermediates per batch row are
    roughly S*H*(2 bf16 am + 4 f32 proj + 4 f32 hidden) bytes, doubled for
    pipelining headroom."""
    budget = min(vmem_cap // 8, 16 * 1024 * 1024)
    per_row = S * H * 10 * 2 + 64
    tb = max(1, budget // per_row)
    if tb >= B:
        return B                          # block == full dim, always legal
    return max(8, (tb // 8) * 8)          # second-to-last dim multiple of 8


def _pick_tile_n(B, num_item, vmem_cap):
    """Item tile for the scatter kernel.  With the f32 VPU path the per-tile
    footprint is only ~3x the (B, tile_n) f32 output block, so the tile is
    sized off VMEM capacity (much larger on 128 MiB v5e/v6e than on v7x)."""
    budget = min(vmem_cap // 8, 16 * 1024 * 1024)
    t = max(128, (budget // (B * 4 * 3)) // 128 * 128)
    n128 = pl.cdiv(num_item, 128) * 128
    t = min(t, n128)
    # Keep >= 2 tiles when possible so the "parallel" grid axis lands work on
    # both TensorCores on v7x (one extra ~0.35us grid step on 1-TC chips).
    if n128 > 128:
        half = pl.cdiv(pl.cdiv(num_item, 2), 128) * 128
        t = min(t, max(128, half))
    return t


# --------------------------------------------------------------------------
# Wrapper
# --------------------------------------------------------------------------
def repeat_recommendation_decoder(all_memory, last_memory, item_seq, mask,
                                  ur_w, wr_w, vr_w, vr_b, num_item,
                                  tile_n=None, tile_b=None):
    B, S, H = all_memory.shape
    vmem_cap = _vmem_capacity_bytes()
    vmem_limit = min((vmem_cap * 3) // 4, 100 * 1024 * 1024)

    # Layout / dtype glue (wrapper-side): bf16 MXU inputs, weight transposes.
    am_bf = all_memory.astype(jnp.bfloat16)            # (B, S, H)
    last_bf = last_memory.astype(jnp.bfloat16)          # (B, H)
    ur_t = ur_w.T.astype(jnp.bfloat16)                  # (H, H)   x @ Ur.T
    wr_t = wr_w.T.astype(jnp.bfloat16)                  # (H, H)   x @ Wr.T
    vr_w_row = vr_w.reshape(1, H).astype(jnp.float32)   # (1, H)
    vr_b11 = vr_b.reshape(1, 1).astype(jnp.float32)     # (1, 1)
    mask_i = mask.astype(jnp.int32)
    item_i = item_seq.astype(jnp.int32)

    # --- step 1: probs (B, S), gridded over the batch axis ---
    if tile_b is None:
        tile_b = _pick_tile_b(B, S, H, vmem_cap)
    b_tiles = pl.cdiv(B, tile_b)

    probs = pl.pallas_call(
        probs_kernel,
        out_shape=jax.ShapeDtypeStruct((B, S), jnp.float32),
        grid=(b_tiles,),
        in_specs=[
            pl.BlockSpec((tile_b, S, H), lambda i: (i, 0, 0)),   # all_memory
            pl.BlockSpec((tile_b, H), lambda i: (i, 0)),         # last_memory
            pl.BlockSpec((tile_b, S), lambda i: (i, 0)),         # mask
            pl.BlockSpec((H, H), lambda i: (0, 0)),              # Ur^T (resident)
            pl.BlockSpec((H, H), lambda i: (0, 0)),              # Wr^T (resident)
            pl.BlockSpec((1, H), lambda i: (0, 0)),              # Vr weight
            pl.BlockSpec((1, 1), lambda i: (0, 0)),              # Vr bias
        ],
        out_specs=pl.BlockSpec((tile_b, S), lambda i: (i, 0)),
        compiler_params=pltpu.CompilerParams(
            dimension_semantics=("parallel",),
            vmem_limit_bytes=vmem_limit),
    )(am_bf, last_bf, mask_i, ur_t, wr_t, vr_w_row, vr_b11)

    # --- step 2: scatter onto items, tiled over N; ragged last tile masked ---
    if tile_n is None:
        tile_n = _pick_tile_n(B, num_item, vmem_cap)
    n_tiles = pl.cdiv(num_item, tile_n)

    out = pl.pallas_call(
        scatter_kernel,
        out_shape=jax.ShapeDtypeStruct((B, num_item), jnp.float32),
        grid=(n_tiles,),
        in_specs=[pl.BlockSpec((B, S), lambda j: (0, 0)),         # probs
                  pl.BlockSpec((B, S), lambda j: (0, 0))],        # item ids
        out_specs=pl.BlockSpec((B, tile_n), lambda j: (0, j)),
        compiler_params=pltpu.CompilerParams(
            dimension_semantics=("parallel",),     # shard N tiles over v7x TCs
            vmem_limit_bytes=vmem_limit),
    )(probs, item_i)

    return out                                        # (B, num_item), no slice


# --------------------------------------------------------------------------
# Pure-JAX reference (mirrors the PyTorch module in eval mode)
# --------------------------------------------------------------------------
def reference_forward(all_memory, last_memory, item_seq, mask,
                      ur_w, wr_w, vr_w, vr_b, num_item):
    a = all_memory @ ur_w.T
    l = (last_memory @ wr_w.T)[:, None, :]
    h = jnp.tanh(l + a)
    scores = (h @ vr_w.T + vr_b).squeeze(-1)                    # (B, S)
    scores = jnp.where(mask != 0, -1000000000.0, scores)
    probs = jax.nn.softmax(scores, axis=-1)                     # (B, S)
    onehot = jax.nn.one_hot(item_seq, num_item, dtype=jnp.float32)
    return jnp.einsum('bs,bsn->bn', probs, onehot)


if __name__ == "__main__":
    B, S, H, N = 2, 8, 32, 300   # batch, seq_len, hidden_size, num_item

    key = jax.random.PRNGKey(0)
    k_am, k_lm, k_seq, k_ur, k_wr, k_vw, k_vb = jax.random.split(key, 7)

    all_memory = jax.random.normal(k_am, (B, S, H), dtype=jnp.float32)
    last_memory = jax.random.normal(k_lm, (B, H), dtype=jnp.float32)
    item_seq = jax.random.randint(k_seq, (B, S), 1, N, dtype=jnp.int32)
    # mask the last two positions of each sequence (as padding)
    mask = (jnp.arange(S)[None, :] >= (S - 2)).astype(jnp.int32).repeat(B, axis=0)

    xavier_hh = (2.0 / (H + H)) ** 0.5
    xavier_h1 = (2.0 / (H + 1)) ** 0.5
    ur_w = xavier_hh * jax.random.normal(k_ur, (H, H), dtype=jnp.float32)
    wr_w = xavier_hh * jax.random.normal(k_wr, (H, H), dtype=jnp.float32)
    vr_w = xavier_h1 * jax.random.normal(k_vw, (1, H), dtype=jnp.float32)
    vr_b = 0.01 * jax.random.normal(k_vb, (1,), dtype=jnp.float32)

    # tile_n=128 forces a multi-tile N grid (3 tiles, last one ragged) even at
    # this toy size; production sizes use the generation-aware auto tile.
    out = repeat_recommendation_decoder(all_memory, last_memory, item_seq, mask,
                                        ur_w, wr_w, vr_w, vr_b, N, tile_n=128)
    out = jax.block_until_ready(out)

    ref = reference_forward(all_memory, last_memory, item_seq, mask,
                            ur_w, wr_w, vr_w, vr_b, N)

    assert out.shape == (B, N)
    # bf16 MXU inputs for Ur/Wr (~2^-9 relative per stage) plus the approx EUP
    # reciprocal bound the deviation from the f32 reference; the scatter itself
    # is now exact f32, so 1e-2 absolute is a comfortable envelope.
    assert jnp.allclose(out, ref, atol=1e-2, rtol=0.0), "mismatch vs reference"
    # each row is (approximately) a probability distribution over items; the
    # only non-f32 step in the mass path is the approx reciprocal.
    assert jnp.allclose(out.sum(axis=-1), 1.0, atol=5e-3)

    print("KERNEL_OK")
</pallas_src>

<mosaic_0001>
module attributes {stable_mosaic.version = 11 : i64} {
  func.func @probs_kernel(%arg0: i32, %arg1: memref<2x8x32xbf16, #tpu.memory_space<vmem>>, %arg2: memref<2x32xbf16, #tpu.memory_space<vmem>>, %arg3: memref<2x8xi32, #tpu.memory_space<vmem>>, %arg4: memref<32x32xbf16, #tpu.memory_space<vmem>>, %arg5: memref<32x32xbf16, #tpu.memory_space<vmem>>, %arg6: memref<1x32xf32, #tpu.memory_space<vmem>>, %arg7: memref<1x1xf32, #tpu.memory_space<vmem>>, %arg8: memref<2x8xf32, #tpu.memory_space<vmem>>) attributes {dimension_semantics = [#tpu.dimension_semantics<parallel>], iteration_bounds = array<i64: 1>, scalar_prefetch = 0 : i64, scratch_operands = 0 : i64, tpu.core_type = #tpu.core_type<tc>, window_params = [{transform_indices = @transform_0, window_bounds = array<i64: 2, 8, 32>}, {transform_indices = @transform_1, window_bounds = array<i64: 2, 32>}, {transform_indices = @transform_2, window_bounds = array<i64: 2, 8>}, {pipeline_mode = #tpu.pipeline_mode<synchronous>, transform_indices = @transform_3, window_bounds = array<i64: 32, 32>}, {pipeline_mode = #tpu.pipeline_mode<synchronous>, transform_indices = @transform_4, window_bounds = array<i64: 32, 32>}, {pipeline_mode = #tpu.pipeline_mode<synchronous>, transform_indices = @transform_5, window_bounds = array<i64: 1, 32>}, {pipeline_mode = #tpu.pipeline_mode<synchronous>, transform_indices = @transform_6, window_bounds = array<i64: 1, 1>}, {transform_indices = @transform_7, window_bounds = array<i64: 2, 8>}]} {
    %c0 = arith.constant 0 : index
    %c0_0 = arith.constant 0 : index
    %c0_1 = arith.constant 0 : index
    %0 = vector.load %arg1[%c0, %c0_0, %c0_1] : memref<2x8x32xbf16, #tpu.memory_space<vmem>>, vector<2x8x32xbf16>
    %1 = vector.shape_cast %0 : vector<2x8x32xbf16> to vector<16x32xbf16>
    %c0_2 = arith.constant 0 : index
    %c0_3 = arith.constant 0 : index
    %2 = vector.load %arg4[%c0_2, %c0_3] : memref<32x32xbf16, #tpu.memory_space<vmem>>, vector<32x32xbf16>
    %cst = arith.constant dense<0.000000e+00> : vector<16x32xf32>
    %3 = tpu.matmul %1, %2, %cst {dimension_numbers = #tpu.dot_dimension_numbers<[1], [0], [0], [1], [0, 0, 1, 1], [], []>} : vector<16x32xbf16>, vector<32x32xbf16>, vector<16x32xf32> -> vector<16x32xf32>
    %c0_4 = arith.constant 0 : index
    %c0_5 = arith.constant 0 : index
    %4 = vector.load %arg2[%c0_4, %c0_5] : memref<2x32xbf16, #tpu.memory_space<vmem>>, vector<2x32xbf16>
    %c0_6 = arith.constant 0 : index
    %c0_7 = arith.constant 0 : index
    %5 = vector.load %arg5[%c0_6, %c0_7] : memref<32x32xbf16, #tpu.memory_space<vmem>>, vector<32x32xbf16>
    %cst_8 = arith.constant dense<0.000000e+00> : vector<2x32xf32>
    %6 = tpu.matmul %4, %5, %cst_8 {dimension_numbers = #tpu.dot_dimension_numbers<[1], [0], [0], [1], [0, 0, 1, 1], [], []>} : vector<2x32xbf16>, vector<32x32xbf16>, vector<2x32xf32> -> vector<2x32xf32>
    %7 = vector.shape_cast %3 : vector<16x32xf32> to vector<2x8x32xf32>
    %8 = vector.shape_cast %6 : vector<2x32xf32> to vector<2x1x32xf32>
    %9 = vector.broadcast %8 : vector<2x1x32xf32> to vector<2x8x32xf32>
    %10 = arith.addf %7, %9 : vector<2x8x32xf32>
    %11 = math.tanh %10 : vector<2x8x32xf32>
    %c0_9 = arith.constant 0 : index
    %c0_10 = arith.constant 0 : index
    %12 = vector.load %arg6[%c0_9, %c0_10] : memref<1x32xf32, #tpu.memory_space<vmem>>, vector<1x32xf32>
    %13 = vector.shape_cast %12 : vector<1x32xf32> to vector<1x1x32xf32>
    %14 = vector.broadcast %13 : vector<1x1x32xf32> to vector<2x8x32xf32>
    %15 = arith.mulf %11, %14 : vector<2x8x32xf32>
    %cst_11 = arith.constant dense<0.000000e+00> : vector<2x8xf32>
    %16 = vector.multi_reduction <add>, %15, %cst_11 [2] : vector<2x8x32xf32> to vector<2x8xf32>
    %c0_12 = arith.constant 0 : index
    %c0_13 = arith.constant 0 : index
    %17 = vector.load %arg7[%c0_12, %c0_13] : memref<1x1xf32, #tpu.memory_space<vmem>>, vector<1x1xf32>
    %18 = vector.broadcast %17 : vector<1x1xf32> to vector<2x8xf32>
    %19 = arith.addf %16, %18 : vector<2x8xf32>
    %c0_14 = arith.constant 0 : index
    %c0_15 = arith.constant 0 : index
    %20 = vector.load %arg3[%c0_14, %c0_15] : memref<2x8xi32, #tpu.memory_space<vmem>>, vector<2x8xi32>
    %c0_i32 = arith.constant 0 : i32
    %21 = vector.broadcast %c0_i32 : i32 to vector<2x8xi32>
    %22 = arith.cmpi ne, %20, %21 : vector<2x8xi32>
    %cst_16 = arith.constant -1.000000e+09 : f32
    %23 = vector.broadcast %cst_16 : f32 to vector<2x8xf32>
    %24 = arith.select %22, %23, %19 : vector<2x8xi1>, vector<2x8xf32>
    %cst_17 = arith.constant dense<0xFF800000> : vector<2xf32>
    %25 = vector.multi_reduction <maximumf>, %24, %cst_17 [1] : vector<2x8xf32> to vector<2xf32>
    %26 = vector.shape_cast %25 : vector<2xf32> to vector<2x1xf32>
    %27 = vector.broadcast %26 : vector<2x1xf32> to vector<2x8xf32>
    %28 = arith.subf %24, %27 : vector<2x8xf32>
    %29 = math.exp %28 : vector<2x8xf32>
    %cst_18 = arith.constant dense<0.000000e+00> : vector<2xf32>
    %30 = vector.multi_reduction <add>, %29, %cst_18 [1] : vector<2x8xf32> to vector<2xf32>
    %31 = vector.shape_cast %30 : vector<2xf32> to vector<2x1xf32>
    %32 = tpu.reciprocal %31 {approx = true} : vector<2x1xf32> -> vector<2x1xf32>
    %33 = vector.broadcast %32 : vector<2x1xf32> to vector<2x8xf32>
    %34 = arith.mulf %29, %33 : vector<2x8xf32>
    %c0_19 = arith.constant 0 : index
    %c0_20 = arith.constant 0 : index
    %35 = vector.load %arg8[%c0_19, %c0_20] : memref<2x8xf32, #tpu.memory_space<vmem>>, vector<2x8xf32>
    tpu.vector_store %arg8[%c0_19, %c0_20], %34 {strides = array<i32>} : memref<2x8xf32, #tpu.memory_space<vmem>>, vector<2x8xf32>,
    return
  }
  func.func @transform_0(%arg0: i32) -> (i32, i32, i32) {
    %c0_i32 = arith.constant 0 : i32
    %c0_i32_0 = arith.constant 0 : i32
    %c0_i32_1 = arith.constant 0 : i32
    return %arg0, %c0_i32, %c0_i32_0 : i32, i32, i32
  }
  func.func @transform_1(%arg0: i32) -> (i32, i32) {
    %c0_i32 = arith.constant 0 : i32
    %c0_i32_0 = arith.constant 0 : i32
    return %arg0, %c0_i32 : i32, i32
  }
  func.func @transform_2(%arg0: i32) -> (i32, i32) {
    %c0_i32 = arith.constant 0 : i32
    %c0_i32_0 = arith.constant 0 : i32
    return %arg0, %c0_i32 : i32, i32
  }
  func.func @transform_3(%arg0: i32) -> (i32, i32) {
    %c0_i32 = arith.constant 0 : i32
    %c0_i32_0 = arith.constant 0 : i32
    %c0_i32_1 = arith.constant 0 : i32
    return %c0_i32, %c0_i32_0 : i32, i32
  }
  func.func @transform_4(%arg0: i32) -> (i32, i32) {
    %c0_i32 = arith.constant 0 : i32
    %c0_i32_0 = arith.constant 0 : i32
    %c0_i32_1 = arith.constant 0 : i32
    return %c0_i32, %c0_i32_0 : i32, i32
  }
  func.func @transform_5(%arg0: i32) -> (i32, i32) {
    %c0_i32 = arith.constant 0 : i32
    %c0_i32_0 = arith.constant 0 : i32
    %c0_i32_1 = arith.constant 0 : i32
    return %c0_i32, %c0_i32_0 : i32, i32
  }
  func.func @transform_6(%arg0: i32) -> (i32, i32) {
    %c0_i32 = arith.constant 0 : i32
    %c0_i32_0 = arith.constant 0 : i32
    %c0_i32_1 = arith.constant 0 : i32
    return %c0_i32, %c0_i32_0 : i32, i32
  }
  func.func @transform_7(%arg0: i32) -> (i32, i32) {
    %c0_i32 = arith.constant 0 : i32
    %c0_i32_0 = arith.constant 0 : i32
    return %arg0, %c0_i32 : i32, i32
  }
}

</mosaic_0001>

<llo_original>
// kernel: tpu_custom_call.1
$region0: #{tpu_custom_call.1}
  #allocation0 [shape = 'u32[]', space=smem, size = 0x4, offset = 0x4, fixed_abs, tag = 'smem constant byte address 0x4 - core index']
  #allocation1 [shape = 'u32[144,128]{1,0:T(1,128)}', space=vmem, size = 0x12000, scoped, tag = 'internal scratch']
  #allocation2 [shape = 'f32[1,1]{1,0:T(1,128)S(1)}', space=vmem, size = 0x200, scoped, tag = 'scoped memory for tpu_custom_call.1']
  %s0 = inlined_call_operand.hbm [shape: bf16[2,8,32], index: 0, kind: input, shape index: {}]
  %s1 = inlined_call_operand.hbm [shape: bf16[2,32], index: 1, kind: input, shape index: {}]
  %s2 = inlined_call_operand.vmem [shape: s32[2,8], index: 2, kind: input, shape index: {}]
  %s3 = inlined_call_operand.hbm [shape: bf16[32,32], index: 3, kind: input, shape index: {}]
  %s4 = inlined_call_operand.vmem [shape: bf16[32,32], index: 4, kind: input, shape index: {}]
  %s5 = inlined_call_operand.vmem [shape: f32[1,32], index: 5, kind: input, shape index: {}]
  %s6 = inlined_call_operand.<no memory space> [shape: f32[1,1], index: 6, kind: input, shape index: {}]
  %s7 = inlined_call_operand.hbm [shape: f32[2,8], index: 7, kind: output, shape index: {}]
  %s8 = sld [smem:[#allocation0]]
  $region50: #{tpu_custom_call.1} parent=0
    _
  %s10 = ssub.s32 1, %s8
  %s11 = scalar_select 0, %s10, %s8
  %v12 = vstv %s6
  %13 = vst [vmem:[#allocation2] sm:$0x1] %v12
  $region1: #{tpu_custom_call.1} parent=0
    #allocation3 [shape = 'u8[4096]{0}', space=vmem, size = 0x1000, scoped, tag = 'input window, operand 0, single buffered']
    #allocation4 [shape = 's32[1]{0}', space=sflag, size = 0x4, scoped, tag = 'scoped memory for tpu_custom_call.1']
    #allocation5 [shape = 's32[1]{0}', space=sflag, size = 0x4, scoped, tag = 'scoped memory for tpu_custom_call.1']
    #allocation6 [shape = 'u8[512]{0}', space=vmem, size = 0x400, scoped, tag = 'input window, operand 1, single buffered']
    #allocation7 [shape = 's32[1]{0}', space=sflag, size = 0x4, scoped, tag = 'scoped memory for tpu_custom_call.1']
    #allocation8 [shape = 'u8[8192]{0}', space=vmem, size = 0x2000, scoped, tag = 'input window, operand 3, single buffered']
    #allocation9 [shape = 'u8[1024]{0}', space=vmem, size = 0x400, scoped, tag = 'output window, operand 0, single buffered']
    %14 = vsyncpa [#allocation4], 0
    %15 = vsyncpa [#allocation7], 0
    %16 = vsyncpa [#allocation5], 0
    // Predicated region
    $region2: #{tpu_custom_call.1} parent=1 // pred_check
      _
    $region3: #{tpu_custom_call.1} parent=1 // pred_check_branch
      %18 = sbr.rel (0) target = $region5
    $region4: #{tpu_custom_call.1} parent=1 // pred_region
      %s20 = ssub.s32 128, 128
      %21 = vsyncadd [#allocation4], %s20
      %s22 = sshll.u32 [#allocation3], 4
      %s23 = int_to_ptr.vmem [resolvable:$true] %s22
      %28 = dma.hbm_to_vmem [thread:$0]  %s0, 128, %s23, [#allocation4], 64, 64, 4
    $region5: #{tpu_custom_call.1} parent=1 // pred_fallthru
      _
    // Predicated region
    $region6: #{tpu_custom_call.1} parent=1 // pred_check
      _
    $region7: #{tpu_custom_call.1} parent=1 // pred_check_branch
      %30 = sbr.rel (0) target = $region9
    $region8: #{tpu_custom_call.1} parent=1 // pred_region
      %s32 = ssub.s32 16, 16
      %33 = vsyncadd [#allocation7], %s32
      %s35 = sshll.u32 [#allocation6], 4
      %s36 = int_to_ptr.vmem [resolvable:$true] %s35
      %38 = dma.hbm_to_vmem [thread:$0]  %s1, 16, %s36, [#allocation7]
    $region9: #{tpu_custom_call.1} parent=1 // pred_fallthru
      _
    // Predicated region
    $region10: #{tpu_custom_call.1} parent=1 // pred_check
      _
    $region11: #{tpu_custom_call.1} parent=1 // pred_check_branch
      %40 = sbr.rel (0) target = $region13
    $region12: #{tpu_custom_call.1} parent=1 // pred_region
      _
    $region13: #{tpu_custom_call.1} parent=1 // pred_fallthru
      _
    // Predicated region
    $region14: #{tpu_custom_call.1} parent=1 // pred_check
      _
    $region15: #{tpu_custom_call.1} parent=1 // pred_check_branch
      %42 = sbr.rel (0) target = $region17
    $region16: #{tpu_custom_call.1} parent=1 // pred_region
      %s44 = ssub.s32 256, 256
      %45 = vsyncadd [#allocation7], %s44
      %s46 = sshll.u32 [#allocation8], 4
      %s47 = int_to_ptr.vmem [resolvable:$true] %s46
      %52 = dma.hbm_to_vmem [thread:$0]  %s3, 256, %s47, [#allocation7], 64, 64, 4
    $region17: #{tpu_custom_call.1} parent=1 // pred_fallthru
      _
    // Predicated region
    $region18: #{tpu_custom_call.1} parent=1 // pred_check
      _
    $region19: #{tpu_custom_call.1} parent=1 // pred_check_branch
      %54 = sbr.rel (0) target = $region21
    $region20: #{tpu_custom_call.1} parent=1 // pred_region
      _
    $region21: #{tpu_custom_call.1} parent=1 // pred_fallthru
      _
    // Predicated region
    $region22: #{tpu_custom_call.1} parent=1 // pred_check
      _
    $region23: #{tpu_custom_call.1} parent=1 // pred_check_branch
      %56 = sbr.rel (0) target = $region25
    $region24: #{tpu_custom_call.1} parent=1 // pred_region
      _
    $region25: #{tpu_custom_call.1} parent=1 // pred_fallthru
      _
    // Predicated region
    $region26: #{tpu_custom_call.1} parent=1 // pred_check
      _
    $region27: #{tpu_custom_call.1} parent=1 // pred_check_branch
      %58 = sbr.rel (0) target = $region29
    $region28: #{tpu_custom_call.1} parent=1 // pred_region
      _
    $region29: #{tpu_custom_call.1} parent=1 // pred_fallthru
      _
    // Predicated region
    $region30: #{tpu_custom_call.1} parent=1 // pred_check
      _
    $region31: #{tpu_custom_call.1} parent=1 // pred_check_branch
      %60 = sbr.rel (0) target = $region33
    $region32: #{tpu_custom_call.1} parent=1 // pred_region
      %61 = dma.done [#allocation4], 128
    $region33: #{tpu_custom_call.1} parent=1 // pred_fallthru
      _
    // Predicated region
    $region34: #{tpu_custom_call.1} parent=1 // pred_check
      _
    $region35: #{tpu_custom_call.1} parent=1 // pred_check_branch
      %63 = sbr.rel (0) target = $region37
    $region36: #{tpu_custom_call.1} parent=1 // pred_region
      %64 = dma.done [#allocation7], 16
    $region37: #{tpu_custom_call.1} parent=1 // pred_fallthru
      _
    // Predicated region
    $region38: #{tpu_custom_call.1} parent=1 // pred_check
      _
    $region39: #{tpu_custom_call.1} parent=1 // pred_check_branch
      %66 = sbr.rel (0) target = $region41
    $region40: #{tpu_custom_call.1} parent=1 // pred_region
      %67 = dma.done [#allocation7], 256
    $region41: #{tpu_custom_call.1} parent=1 // pred_fallthru
      _
    %v69 = vld [vmem:[#allocation3] sm:$0xf]
    %v70 = vld [vmem:[#allocation3 + $0x4] sm:$0xf]
    %v71 = vld [vmem:[#allocation8] sm:$0xf]
    %v72 = vld [vmem:[#allocation8 + $0x4] sm:$0xf]
    %v73 = vld [vmem:[#allocation8 + $0x8] sm:$0xf]
    %v74 = vld [vmem:[#allocation8 + $0xc] sm:$0xf]
    %v77 = vunpack.c.l.b16 %v69
    %v78 = vunpack.c.l.b16 %v70
    %v79 = vpack.c.b16 %v78, %v77
    %v84 = vunpack.c.l.b16 %v71
    %v85 = vunpack.c.l.b16 %v72
    %v86 = vunpack.c.l.b16 %v73
    %v87 = vunpack.c.l.b16 %v74
    %v88 = vpack.c.b16 %v85, %v84
    %v89 = vpack.c.b16 %v87, %v86
    %vm92 = vcmask 261120
    %v94 = vsel %vm92, %v79, 0
    %96 = vmatprep.subr.bf16.mxu0 0
    %97 = vmatpush1.bf16.msra.mxu0 %v88
    %98 = vmatprep.subr.bf16.mxu0 0
    %99 = vmatpush1.bf16.msra.mxu0 %v89
    %100 = vmatprep.subr.bf16.mxu0 0
    %101 = vmatpush1.bf16.msra.mxu0 0
    %102 = vmatprep.subr.bf16.mxu0 0
    %103 = vmatpush1.bf16.msra.mxu0 0
    %104 = vmatprep.subr.bf16.mxu0 0
    %105 = vmatpush1.bf16.msra.mxu0 0
    %106 = vmatprep.subr.bf16.mxu0 0
    %107 = vmatpush1.bf16.msra.mxu0 0
    %108 = vmatprep.subr.bf16.mxu0 0
    %109 = vmatpush1.bf16.msra.mxu0 0
    %110 = vmatprep.subr.bf16.mxu0 0
    %111 = vmatpush1.bf16.msra.mxu0 0
    %112 = vmatprep.subr.bf16.mxu0 0
    %113 = vmatpush1.bf16.msra.mxu0 0
    %114 = vmatprep.subr.bf16.mxu0 0
    %115 = vmatpush1.bf16.msra.mxu0 0
    %116 = vmatprep.subr.bf16.mxu0 0
    %117 = vmatpush1.bf16.msra.mxu0 0
    %118 = vmatprep.subr.bf16.mxu0 0
    %119 = vmatpush1.bf16.msra.mxu0 0
    %120 = vmatprep.subr.bf16.mxu0 0
    %121 = vmatpush1.bf16.msra.mxu0 0
    %122 = vmatprep.subr.bf16.mxu0 0
    %123 = vmatpush1.bf16.msra.mxu0 0
    %124 = vmatprep.subr.bf16.mxu0 0
    %125 = vmatpush1.bf16.msra.mxu0 0
    %126 = vmatprep.subr.bf16.mxu0 0
    %127 = vmatpush1.bf16.msra.mxu0 0
    %128 = vmatprep.mubr.bf16.mxu0 0
    %129 = vmatmul.mubr.bf16.gmra.mrb[0].mxu0 %v94
    %v130 = vpop.f32.mrb[0].mxu0
    %v131 = vadd.f32 0.0, %v130
    %v132 = vpop.f32.mrb[0].mxu0
    %v133 = vpop.f32.mrb[0].mxu0
    %v134 = vadd.f32 0.0, %v133
    %v135 = vpop.f32.mrb[0].mxu0
    %136 = vdwg.mxu0
    %v137 = vld [vmem:[#allocation6] sm:$0x1]
    %v138 = vld [vmem:[%s4] sm:$0xf]
    %v139 = vld [vmem:[%s4 + $0x4] sm:$0xf]
    %v140 = vld [vmem:[%s4 + $0x8] sm:$0xf]
    %v141 = vld [vmem:[%s4 + $0xc] sm:$0xf]
    %v146 = vunpack.c.l.b16 %v138
    %v147 = vunpack.c.l.b16 %v139
    %v148 = vunpack.c.l.b16 %v140
    %v149 = vunpack.c.l.b16 %v141
    %v150 = vpack.c.b16 %v147, %v146
    %v151 = vpack.c.b16 %v149, %v148
    %v155 = vsel %vm92, %v137, 0
    %157 = vmatprep.subr.bf16.mxu0 0
    %158 = vmatpush1.bf16.msra.mxu0 %v150
    %159 = vmatprep.subr.bf16.mxu0 0
    %160 = vmatpush1.bf16.msra.mxu0 %v151
    %161 = vmatprep.subr.bf16.mxu0 0
    %162 = vmatpush1.bf16.msra.mxu0 0
    %163 = vmatprep.subr.bf16.mxu0 0
    %164 = vmatpush1.bf16.msra.mxu0 0
    %165 = vmatprep.subr.bf16.mxu0 0
    %166 = vmatpush1.bf16.msra.mxu0 0
    %167 = vmatprep.subr.bf16.mxu0 0
    %168 = vmatpush1.bf16.msra.mxu0 0
    %169 = vmatprep.subr.bf16.mxu0 0
    %170 = vmatpush1.bf16.msra.mxu0 0
    %171 = vmatprep.subr.bf16.mxu0 0
    %172 = vmatpush1.bf16.msra.mxu0 0
    %173 = vmatprep.subr.bf16.mxu0 0
    %174 = vmatpush1.bf16.msra.mxu0 0
    %175 = vmatprep.subr.bf16.mxu0 0
    %176 = vmatpush1.bf16.msra.mxu0 0
    %177 = vmatprep.subr.bf16.mxu0 0
    %178 = vmatpush1.bf16.msra.mxu0 0
    %179 = vmatprep.subr.bf16.mxu0 0
    %180 = vmatpush1.bf16.msra.mxu0 0
    %181 = vmatprep.subr.bf16.mxu0 0
    %182 = vmatpush1.bf16.msra.mxu0 0
    %183 = vmatprep.subr.bf16.mxu0 0
    %184 = vmatpush1.bf16.msra.mxu0 0
    %185 = vmatprep.subr.bf16.mxu0 0
    %186 = vmatpush1.bf16.msra.mxu0 0
    %187 = vmatprep.subr.bf16.mxu0 0
    %188 = vmatpush1.bf16.msra.mxu0 0
    %189 = vmatprep.mubr.bf16.mxu0 0
    %190 = vmatmul.mubr.bf16.gmra.mrb[0].mxu0 %v155
    %v191 = vpop.f32.mrb[0].mxu0
    %v192 = vadd.f32 0.0, %v191
    %v193 = vpop.f32.mrb[0].mxu0
    %v194 = vpop.f32.mrb[0].mxu0
    %v195 = vpop.f32.mrb[0].mxu0
    %196 = vdwg.mxu0
    %v199 = vunpack.c.l.s4 1966171168
    %v200 = vunpack.c.0.s8 %v199
    %v201 = vlaneseq
    %v202 = vshrl.u32 %v201, 7
    %v203 = vsub.s32 %v200, %v202
    %v204 = vrot.slane %v192, %v203
    %v205 = vcombine.high %v204, %v204
    %v207 = vunpack.c.l.s4 1966171168
    %v208 = vunpack.c.0.s8 %v207
    %v209 = vlaneseq
    %v210 = vshrl.u32 %v209, 7
    %v211 = vsub.s32 %v208, %v210
    %v212 = vrot.slane %v204, %v211
    %v214 = vunpack.c.l.s4 1966171168
    %v215 = vunpack.c.0.s8 %v214
    %v216 = vlaneseq
    %v217 = vshrl.u32 %v216, 7
    %v218 = vsub.s32 %v215, %v217
    %v219 = vrot.slane %v205, %v218
    %v220 = vlaneseq
    %v221 = vshrl.u32 %v220, 7
    %v222 = vsub.s32 0, %v221
    %v223 = vrot.slane %v212, %v222
    %v224 = vlaneseq
    %v225 = vshrl.u32 %v224, 7
    %v226 = vsub.s32 0, %v225
    %v227 = vrot.slane %v219, %v226
    %v230 = vadd.f32 %v131, %v223
    %v231 = vadd.f32 %v134, %v227
    %v232 = vtanh.pop %v230
    %v233 = vtanh.pop %v231
    %v234 = vld [vmem:[%s5] sm:$0x1]
    %v236 = vlaneseq
    %v237 = vshrl.u32 %v236, 7
    %v238 = vsub.s32 0, %v237
    %v239 = vrot.slane %v234, %v238
    %v241 = vmul.f32 %v232, %v239
    %v242 = vmul.f32 %v233, %v239
    %v243 = vsel %vm92, %v241, 0.0
    %244 = vadd.xlane.f32.xlu0 %v243
    %v245 = vpop.xlane.xlu0 %244
    %v246 = vsel %vm92, %v242, 0.0
    %247 = vadd.xlane.f32.xlu0 %v246
    %v248 = vpop.xlane.xlu0 %247
    %v249 = vld [vmem:[#allocation2] sm:$0x1]
    %v251 = vlaneseq
    %v252 = vshrl.u32 %v251, 7
    %v253 = vsub.s32 0, %v252
    %v254 = vrot.slane %v249, %v253
    %255 = vset.pattern.permute.xlu0 0
    %256 = vperm.xlu0 %255, %v254
    %v257 = vpop.permute.xlu0 %256
    %v259 = vadd.f32 %v245, %v257
    %v260 = vadd.f32 %v248, %v257
    %v261 = vld [vmem:[%s2] sm:$0x3]
    %vm262 = vcmp.ne.s32.totalorder %v261, 0
    %v265 = vlaneseq
    %v266 = vand.u32 %v265, 127
    %v267 = vlaneseq
    %v268 = vshrl.u32 %v267, 7
    %v269 = vsub.s32 %v266, %v268
    %v270 = vrot.slane %v259, %v269
    %v271 = vlaneseq
    %v272 = vshrl.u32 %v271, 7
    %v273 = vsub.s32 %v266, %v272
    %v274 = vrot.slane %v260, %v273
    %vm275 = vcmask 1041409
    %v276 = vsel %vm275, %v274, %v270
    %v278 = vsel %vm262, -1e+09, %v276
    %vm279 = vcmask 58368
    %v280 = vsel %vm279, %v278, -inf
    %281 = vmax.xlane.f32.xlu0 %v280
    %v282 = vpop.xlane.xlu0 %281
    %v283 = vsub.f32 %v278, %v282
    %v284 = vmul.f32 %v283, 1.442695
    %v285 = vpow.pop %v284
    %v286 = vsel %vm279, %v285, 0.0
    %287 = vadd.xlane.f32.xlu0 %v286
    %v288 = vpop.xlane.xlu0 %287
    %v289 = vrcp.pop %v288
    %v290 = vmul.f32 %v285, %v289
    %291 = vst.msk [vmem:[#allocation9] sm:$0x3] %vm279, %v290
    // Predicated region
    $region42: #{tpu_custom_call.1} parent=1 // pred_check
      _
    $region43: #{tpu_custom_call.1} parent=1 // pred_check_branch
      %293 = sbr.rel (0) target = $region45
    $region44: #{tpu_custom_call.1} parent=1 // pred_region
      %s295 = ssub.s32 32, 32
      %296 = vsyncadd [#allocation5], %s295
      %s298 = sshll.u32 [#allocation9], 4
      %s299 = int_to_ptr.vmem [resolvable:$true] %s298
      %301 = dma.vmem_to_hbm [thread:$0]  %s299, 32, %s7, [#allocation5]
    $region45: #{tpu_custom_call.1} parent=1 // pred_fallthru
      _
    // Predicated region
    $region46: #{tpu_custom_call.1} parent=1 // pred_check
      _
    $region47: #{tpu_custom_call.1} parent=1 // pred_check_branch
      %303 = sbr.rel (0) target = $region49
    $region48: #{tpu_custom_call.1} parent=1 // pred_region
      %304 = dma.done [#allocation5], 32
    $region49: #{tpu_custom_call.1} parent=1 // pred_fallthru
      _
    %305 = vsyncpa [#allocation4], 1
    %306 = vsyncpa [#allocation7], 1
    %307 = vsyncpa [#allocation5], 1

</llo_original>
